<compile_context>
chip_gen: v7x
topology: tpu7x:2x2x1
jax: 0.10.0
libtpu: 0.0.40
codegen_flags: <defaults>
</compile_context>

<pallas_src>
import functools

import jax
import jax.numpy as jnp
from jax.experimental import pallas as pl
from jax.experimental.pallas import tpu as pltpu

LN_EPS = 1e-5


def _round_up(v, m):
    return (v + m - 1) // m * m


def _vmem_capacity_bytes():
    # Hardware query; conservative v7x-sized fallback if unavailable.
    try:
        return int(pltpu.get_tpu_info().vmem_capacity_bytes)
    except Exception:
        return 64 << 20


def _linear_wrapper_kernel(x_ref, w_ref, b_ref, o_ref, *, relu, layer_norm, d_in):
    """x_ref: (tm, D_in)   w_ref: (D_in, tn) bf16   b_ref: (1, tn) f32."""
    x = x_ref[...].astype(jnp.float32)

    if layer_norm:
        inv_n = 1.0 / d_in
        s = jnp.sum(x, axis=-1, keepdims=True)
        sq = jnp.sum(x * x, axis=-1, keepdims=True)
        mean = s * inv_n
        var = jnp.maximum(sq * inv_n - mean * mean, 0.0)  # single-pass, clamped
        xn = (x - mean) * jax.lax.rsqrt(var + LN_EPS)  # gamma/beta folded into W/b
    else:
        xn = x

    # Dropout (p=0.1) in inference mode == identity.
    # TODO(synk): training-mode dropout would need a pltpu.prng_* mask here.

    # bf16 x bf16 MXU matmul with f32 accumulation.
    y = jnp.dot(xn.astype(jnp.bfloat16), w_ref[...],
                preferred_element_type=jnp.float32)
    y = y + b_ref[...]
    if relu:
        y = jnp.maximum(y, 0.0)
    o_ref[...] = y.astype(o_ref.dtype)


def prepare_linear_wrapper_params(gamma, beta, weight, bias, *, layer_norm=True):
    """One-time parameter preparation (do at model init, reuse every forward).

    weight: (D_in, D_out) (already transposed vs torch.nn.Linear's (out, in)),
    bias: (D_out,), gamma/beta: (D_in,).  Returns (w_bf16 (D_in, D_out),
    b_f32 (1, D_out)) with the LayerNorm affine folded into the linear layer.
    """
    w = weight.astype(jnp.float32)
    b = bias.astype(jnp.float32)
    if layer_norm:
        b = b + beta.astype(jnp.float32) @ w
        w = gamma.astype(jnp.float32)[:, None] * w
    return w.astype(jnp.bfloat16), b.reshape(1, -1)


def linear_wrapper_forward(x, w_bf16, b_f32, *, relu=True, layer_norm=True,
                           tm=None, tn=None):
    """x: (N, L, D_in) -> (N, L, D_out). w_bf16/b_f32 from prepare_linear_wrapper_params."""
    N, L, D_in = x.shape
    D_out = w_bf16.shape[1]
    R = N * L
    x2 = x.reshape(R, D_in)  # view only; x is NOT padded or copied

    vmem_cap = _vmem_capacity_bytes()
    big_vmem = vmem_cap >= (100 << 20)        # v5e/v6e: 128 MiB/TC; v7x: 64 MiB/TC
    vmem_budget = int(vmem_cap * 0.75)        # headroom for Mosaic scratch/relayouts

    # ---- D_out tiling: keep the whole D_out per tile (cols == 1, weight DMAed once)
    # while the bf16 weight slab is comfortably small; otherwise 512-wide lane tiles.
    weight_tile_thresh = (24 << 20) if big_vmem else (8 << 20)
    if tn is None:
        tn = D_out if (D_in * D_out * 2 <= weight_tile_thresh or D_out <= 512) else 512
    # tn is either the full D_out (any value, "full dim" satisfies layout rules) or a
    # multiple of 128 when D_out is tiled.
    if tn != D_out:
        assert tn % 128 == 0, "tiled tn must be a multiple of 128 (lane width)"

    # ---- row tiling: large tiles amortize the ~0.35us/step overhead; aim for >=4
    # row steps so the 'parallel' rows axis can split across TensorCores (v7x).
    tm_max = 1024 if big_vmem else 512
    if tm is None:
        tm = max(16, min(tm_max, _round_up(pl.cdiv(R, 4), 16)))
    tm = min(tm, _round_up(R, 16))
    assert tm % 8 == 0, "tm must be a multiple of 8 (sublane); 16 preferred for bf16"

    x_b = x2.dtype.itemsize
    o_b = x.dtype.itemsize

    def _need(tm_, tn_):
        return (2 * tm_ * D_in * x_b              # double-buffered x tiles
                + 2 * (D_in * tn_ * 2 + tn_ * 4)  # weight + bias tiles (2 bufs)
                + 2 * tm_ * tn_ * o_b             # double-buffered output tiles
                + tm_ * D_in * 6 + tm_ * tn_ * 4)  # f32 x / bf16 xn / f32 y temps

    # If the tile budget exceeds VMEM, shrink the TILE (tm first, then tn) rather
    # than clamping vmem_limit below what the tiles require (v7x safety).
    while _need(tm, tn) > vmem_budget and tm > 16:
        tm = max(16, _round_up(tm // 2, 16))
    while _need(tm, tn) > vmem_budget and tn > 128:
        tn = max(128, _round_up(tn // 2, 128))
    vmem_limit = int(min(max(int(1.5 * _need(tm, tn)), 32 << 20), vmem_budget))

    rows = pl.cdiv(R, tm)
    cols = pl.cdiv(D_out, tn)

    # ---- grid axis order: keep the larger operand's block index constant along the
    # inner axis so Pallas skips its re-DMA (only matters when cols > 1).
    w_bytes = D_in * D_out * 2
    x_bytes = R * D_in * x_b
    rows_inner = cols > 1 and (rows - 1) * w_bytes > (cols - 1) * x_bytes

    if rows_inner:
        grid = (cols, rows)
        x_map = lambda j, i: (i, 0)
        w_map = lambda j, i: (0, j)
        b_map = lambda j, i: (0, j)
        o_map = lambda j, i: (i, j)
    else:
        grid = (rows, cols)
        x_map = lambda i, j: (i, 0)
        w_map = lambda i, j: (0, j)
        b_map = lambda i, j: (0, j)
        o_map = lambda i, j: (i, j)

    kernel = functools.partial(_linear_wrapper_kernel,
                               relu=relu, layer_norm=layer_norm, d_in=D_in)

    out2 = pl.pallas_call(
        kernel,
        out_shape=jax.ShapeDtypeStruct((R, D_out), x.dtype),
        grid_spec=pltpu.PrefetchScalarGridSpec(
            num_scalar_prefetch=0,
            grid=grid,
            in_specs=[
                pl.BlockSpec((tm, D_in), x_map),   # activation row tile (no padding)
                pl.BlockSpec((D_in, tn), w_map),   # bf16 weight (LN affine folded)
                pl.BlockSpec((1, tn), b_map),      # f32 bias (LN affine folded)
            ],
            out_specs=pl.BlockSpec((tm, tn), o_map),
        ),
        compiler_params=pltpu.CompilerParams(
            dimension_semantics=("parallel", "parallel"),
            vmem_limit_bytes=vmem_limit,
        ),
    )(x2, w_bf16, b_f32)

    return out2.reshape(N, L, D_out)


def _reference(x, gamma, beta, weight, bias, relu=True, layer_norm=True):
    xf = x.astype(jnp.float32)
    if layer_norm:
        mean = jnp.mean(xf, axis=-1, keepdims=True)
        var = jnp.mean((xf - mean) ** 2, axis=-1, keepdims=True)
        xf = (xf - mean) / jnp.sqrt(var + LN_EPS) * gamma + beta
    y = xf @ weight.astype(jnp.float32) + bias
    if relu:
        y = jnp.maximum(y, 0.0)
    return y.astype(x.dtype)


if __name__ == "__main__":
    key = jax.random.PRNGKey(0)
    N, L, D_in, D_out = 2, 8, 32, 32
    k_x, k_w, k_b, k_g, k_be = jax.random.split(key, 5)

    x = jax.random.normal(k_x, (N, L, D_in), dtype=jnp.float32)

    # Deterministic synthetic parameters (nn.LayerNorm(D_in), nn.Linear(D_in, D_out)).
    bound = 1.0 / jnp.sqrt(D_in)
    weight = jax.random.uniform(k_w, (D_in, D_out), minval=-bound, maxval=bound,
                                dtype=jnp.float32)
    bias = jax.random.uniform(k_b, (D_out,), minval=-bound, maxval=bound,
                              dtype=jnp.float32)
    gamma = 1.0 + 0.1 * jax.random.normal(k_g, (D_in,), dtype=jnp.float32)
    beta = 0.1 * jax.random.normal(k_be, (D_in,), dtype=jnp.float32)

    # One-time parameter preparation (LN affine folded, bf16 weight), then forward.
    w_prep, b_prep = prepare_linear_wrapper_params(gamma, beta, weight, bias,
                                                   layer_norm=True)
    out = linear_wrapper_forward(x, w_prep, b_prep, relu=True, layer_norm=True)
    out = jax.block_until_ready(out)

    ref = _reference(x, gamma, beta, weight, bias, relu=True, layer_norm=True)
    assert out.shape == (N, L, D_out)
    # bf16 matmul operands (f32 accumulation) vs pure-f32 reference -> loosened tol.
    assert jnp.allclose(out, ref, atol=2e-2, rtol=2e-2), "mismatch vs reference"

    print("KERNEL_OK")
</pallas_src>

<mosaic_0001>
module attributes {stable_mosaic.version = 11 : i64} {
  func.func @_linear_wrapper_kernel(%arg0: i32, %arg1: i32, %arg2: memref<16x32xf32, #tpu.memory_space<vmem>>, %arg3: memref<32x32xbf16, #tpu.memory_space<vmem>>, %arg4: memref<1x32xf32, #tpu.memory_space<vmem>>, %arg5: memref<16x32xf32, #tpu.memory_space<vmem>>) attributes {dimension_semantics = [#tpu.dimension_semantics<parallel>, #tpu.dimension_semantics<parallel>], iteration_bounds = array<i64: 1, 1>, scalar_prefetch = 0 : i64, scratch_operands = 0 : i64, tpu.core_type = #tpu.core_type<tc>, window_params = [{transform_indices = @transform_0, window_bounds = array<i64: 16, 32>}, {transform_indices = @transform_1, window_bounds = array<i64: 32, 32>}, {transform_indices = @transform_2, window_bounds = array<i64: 1, 32>}, {transform_indices = @transform_3, window_bounds = array<i64: 16, 32>}]} {
    %c0 = arith.constant 0 : index
    %c0_0 = arith.constant 0 : index
    %0 = vector.load %arg2[%c0, %c0_0] : memref<16x32xf32, #tpu.memory_space<vmem>>, vector<16x32xf32>
    %cst = arith.constant dense<0.000000e+00> : vector<16xf32>
    %1 = vector.multi_reduction <add>, %0, %cst [1] : vector<16x32xf32> to vector<16xf32>
    %2 = vector.shape_cast %1 : vector<16xf32> to vector<16x1xf32>
    %3 = arith.mulf %0, %0 : vector<16x32xf32>
    %cst_1 = arith.constant dense<0.000000e+00> : vector<16xf32>
    %4 = vector.multi_reduction <add>, %3, %cst_1 [1] : vector<16x32xf32> to vector<16xf32>
    %5 = vector.shape_cast %4 : vector<16xf32> to vector<16x1xf32>
    %cst_2 = arith.constant 3.125000e-02 : f32
    %6 = vector.broadcast %cst_2 : f32 to vector<16x1xf32>
    %7 = arith.mulf %2, %6 : vector<16x1xf32>
    %cst_3 = arith.constant 3.125000e-02 : f32
    %8 = vector.broadcast %cst_3 : f32 to vector<16x1xf32>
    %9 = arith.mulf %5, %8 : vector<16x1xf32>
    %10 = arith.mulf %7, %7 : vector<16x1xf32>
    %11 = arith.subf %9, %10 : vector<16x1xf32>
    %cst_4 = arith.constant 0.000000e+00 : f32
    %12 = vector.broadcast %cst_4 : f32 to vector<16x1xf32>
    %13 = arith.maximumf %11, %12 : vector<16x1xf32>
    %14 = vector.broadcast %7 : vector<16x1xf32> to vector<16x32xf32>
    %15 = arith.subf %0, %14 : vector<16x32xf32>
    %cst_5 = arith.constant 9.99999974E-6 : f32
    %16 = vector.broadcast %cst_5 : f32 to vector<16x1xf32>
    %17 = arith.addf %13, %16 : vector<16x1xf32>
    %18 = math.rsqrt %17 : vector<16x1xf32>
    %19 = vector.broadcast %18 : vector<16x1xf32> to vector<16x32xf32>
    %20 = arith.mulf %15, %19 : vector<16x32xf32>
    %21 = arith.truncf %20 : vector<16x32xf32> to vector<16x32xbf16>
    %c0_6 = arith.constant 0 : index
    %c0_7 = arith.constant 0 : index
    %22 = vector.load %arg3[%c0_6, %c0_7] : memref<32x32xbf16, #tpu.memory_space<vmem>>, vector<32x32xbf16>
    %cst_8 = arith.constant dense<0.000000e+00> : vector<16x32xf32>
    %23 = tpu.matmul %21, %22, %cst_8 {dimension_numbers = #tpu.dot_dimension_numbers<[1], [0], [0], [1], [0, 0, 1, 1], [], []>} : vector<16x32xbf16>, vector<32x32xbf16>, vector<16x32xf32> -> vector<16x32xf32>
    %c0_9 = arith.constant 0 : index
    %c0_10 = arith.constant 0 : index
    %24 = vector.load %arg4[%c0_9, %c0_10] : memref<1x32xf32, #tpu.memory_space<vmem>>, vector<1x32xf32>
    %25 = vector.broadcast %24 : vector<1x32xf32> to vector<16x32xf32>
    %26 = arith.addf %23, %25 : vector<16x32xf32>
    %cst_11 = arith.constant 0.000000e+00 : f32
    %27 = vector.broadcast %cst_11 : f32 to vector<16x32xf32>
    %28 = arith.maximumf %26, %27 : vector<16x32xf32>
    %c0_12 = arith.constant 0 : index
    %c0_13 = arith.constant 0 : index
    %29 = vector.load %arg5[%c0_12, %c0_13] : memref<16x32xf32, #tpu.memory_space<vmem>>, vector<16x32xf32>
    tpu.vector_store %arg5[%c0_12, %c0_13], %28 {strides = array<i32>} : memref<16x32xf32, #tpu.memory_space<vmem>>, vector<16x32xf32>,
    return
  }
  func.func @transform_0(%arg0: i32, %arg1: i32) -> (i32, i32) {
    %c0_i32 = arith.constant 0 : i32
    %c0_i32_0 = arith.constant 0 : i32
    return %arg0, %c0_i32 : i32, i32
  }
  func.func @transform_1(%arg0: i32, %arg1: i32) -> (i32, i32) {
    %c0_i32 = arith.constant 0 : i32
    %c0_i32_0 = arith.constant 0 : i32
    return %c0_i32, %arg1 : i32, i32
  }
  func.func @transform_2(%arg0: i32, %arg1: i32) -> (i32, i32) {
    %c0_i32 = arith.constant 0 : i32
    %c0_i32_0 = arith.constant 0 : i32
    return %c0_i32, %arg1 : i32, i32
  }
  func.func @transform_3(%arg0: i32, %arg1: i32) -> (i32, i32) {
    %c0_i32 = arith.constant 0 : i32
    return %arg0, %arg1 : i32, i32
  }
}

</mosaic_0001>

<llo_original>
// kernel: tpu_custom_call.1
$region0: #{tpu_custom_call.1}
  #allocation0 [shape = 'u32[]', space=smem, size = 0x4, offset = 0x4, fixed_abs, tag = 'smem constant byte address 0x4 - core index']
  #allocation1 [shape = 'u32[144,128]{1,0:T(1,128)}', space=vmem, size = 0x12000, scoped, tag = 'internal scratch']
  %s0 = inlined_call_operand.hbm [shape: f32[16,32], index: 0, kind: input, shape index: {}]
  %s1 = inlined_call_operand.hbm [shape: bf16[32,32], index: 1, kind: input, shape index: {}]
  %s2 = inlined_call_operand.vmem [shape: f32[1,32], index: 2, kind: input, shape index: {}]
  %s3 = inlined_call_operand.hbm [shape: f32[16,32], index: 3, kind: output, shape index: {}]
  %s4 = sld [smem:[#allocation0]]
  $region30: #{tpu_custom_call.1} parent=0
    _
  %s6 = ssub.s32 1, %s4
  %s7 = scalar_select 0, %s6, %s4
  $region1: #{tpu_custom_call.1} parent=0
    #allocation2 [shape = 'u8[8192]{0}', space=vmem, size = 0x2000, scoped, tag = 'input window, operand 0, single buffered']
    #allocation3 [shape = 's32[1]{0}', space=sflag, size = 0x4, scoped, tag = 'scoped memory for tpu_custom_call.1']
    #allocation4 [shape = 's32[1]{0}', space=sflag, size = 0x4, scoped, tag = 'scoped memory for tpu_custom_call.1']
    #allocation5 [shape = 'u8[8192]{0}', space=vmem, size = 0x2000, scoped, tag = 'input window, operand 1, single buffered']
    #allocation6 [shape = 's32[1]{0}', space=sflag, size = 0x4, scoped, tag = 'scoped memory for tpu_custom_call.1']
    #allocation7 [shape = 'u8[8192]{0}', space=vmem, size = 0x2000, scoped, tag = 'output window, operand 0, single buffered']
    %8 = vsyncpa [#allocation3], 0
    %9 = vsyncpa [#allocation6], 0
    %10 = vsyncpa [#allocation4], 0
    // Predicated region
    $region2: #{tpu_custom_call.1} parent=1 // pred_check
      _
    $region3: #{tpu_custom_call.1} parent=1 // pred_check_branch
      %12 = sbr.rel (0) target = $region5
    $region4: #{tpu_custom_call.1} parent=1 // pred_region
      %s14 = ssub.s32 256, 256
      %15 = vsyncadd [#allocation3], %s14
      %s16 = sshll.u32 [#allocation2], 4
      %s17 = int_to_ptr.vmem [resolvable:$true] %s16
      %22 = dma.hbm_to_vmem [thread:$0]  %s0, 256, %s17, [#allocation3], 128, 128, 8
    $region5: #{tpu_custom_call.1} parent=1 // pred_fallthru
      _
    // Predicated region
    $region6: #{tpu_custom_call.1} parent=1 // pred_check
      _
    $region7: #{tpu_custom_call.1} parent=1 // pred_check_branch
      %24 = sbr.rel (0) target = $region9
    $region8: #{tpu_custom_call.1} parent=1 // pred_region
      %s26 = ssub.s32 256, 256
      %27 = vsyncadd [#allocation6], %s26
      %s28 = sshll.u32 [#allocation5], 4
      %s29 = int_to_ptr.vmem [resolvable:$true] %s28
      %34 = dma.hbm_to_vmem [thread:$0]  %s1, 256, %s29, [#allocation6], 64, 64, 4
    $region9: #{tpu_custom_call.1} parent=1 // pred_fallthru
      _
    // Predicated region
    $region10: #{tpu_custom_call.1} parent=1 // pred_check
      _
    $region11: #{tpu_custom_call.1} parent=1 // pred_check_branch
      %36 = sbr.rel (0) target = $region13
    $region12: #{tpu_custom_call.1} parent=1 // pred_region
      _
    $region13: #{tpu_custom_call.1} parent=1 // pred_fallthru
      _
    // Predicated region
    $region14: #{tpu_custom_call.1} parent=1 // pred_check
      _
    $region15: #{tpu_custom_call.1} parent=1 // pred_check_branch
      %38 = sbr.rel (0) target = $region17
    $region16: #{tpu_custom_call.1} parent=1 // pred_region
      %39 = dma.done [#allocation3], 256
    $region17: #{tpu_custom_call.1} parent=1 // pred_fallthru
      _
    // Predicated region
    $region18: #{tpu_custom_call.1} parent=1 // pred_check
      _
    $region19: #{tpu_custom_call.1} parent=1 // pred_check_branch
      %41 = sbr.rel (0) target = $region21
    $region20: #{tpu_custom_call.1} parent=1 // pred_region
      %42 = dma.done [#allocation6], 256
    $region21: #{tpu_custom_call.1} parent=1 // pred_fallthru
      _
    %v44 = vld [vmem:[#allocation2] sm:$0xff]
    %v45 = vld [vmem:[#allocation2 + $0x8] sm:$0xff]
    %vm46 = vcmask 261120
    %v47 = vsel %vm46, %v44, 0.0
    %48 = vadd.xlane.f32.xlu0 %v47
    %v49 = vpop.xlane.xlu0 %48
    %v50 = vsel %vm46, %v45, 0.0
    %51 = vadd.xlane.f32.xlu0 %v50
    %v52 = vpop.xlane.xlu0 %51
    %v53 = vmul.f32 %v44, %v44
    %v54 = vmul.f32 %v45, %v45
    %v55 = vsel %vm46, %v53, 0.0
    %56 = vadd.xlane.f32.xlu0 %v55
    %v57 = vpop.xlane.xlu0 %56
    %v58 = vsel %vm46, %v54, 0.0
    %59 = vadd.xlane.f32.xlu0 %v58
    %v60 = vpop.xlane.xlu0 %59
    %v61 = vmul.f32 %v49, 0.03125
    %v62 = vmul.f32 %v52, 0.03125
    %v63 = vmul.f32 %v57, 0.03125
    %v64 = vmul.f32 %v60, 0.03125
    %v65 = vmul.f32 %v61, %v61
    %v66 = vmul.f32 %v62, %v62
    %v67 = vsub.f32 %v63, %v65
    %v68 = vsub.f32 %v64, %v66
    %v69 = vmax.f32 %v67, 0.0
    %v70 = vmax.f32 %v68, 0.0
    %v71 = vsub.f32 %v44, %v61
    %v72 = vsub.f32 %v45, %v62
    %v73 = vadd.f32 %v69, 1e-05
    %v74 = vadd.f32 %v70, 1e-05
    %v75 = vrsqrt.pop %v73
    %v76 = vrsqrt.pop %v74
    %v77 = vmul.f32 %v71, %v75
    %v78 = vmul.f32 %v72, %v76
    %v79 = vpack.c.bf16 %v78, %v77
    %v80 = vld [vmem:[#allocation5] sm:$0xf]
    %v81 = vld [vmem:[#allocation5 + $0x4] sm:$0xf]
    %v82 = vld [vmem:[#allocation5 + $0x8] sm:$0xf]
    %v83 = vld [vmem:[#allocation5 + $0xc] sm:$0xf]
    %v84 = vld [vmem:[%s2] sm:$0x1]
    %v86 = vlaneseq
    %v87 = vshrl.u32 %v86, 7
    %v88 = vsub.s32 0, %v87
    %v89 = vrot.slane %v84, %v88
    %v95 = vunpack.c.l.b16 %v80
    %v96 = vunpack.c.l.b16 %v81
    %v97 = vunpack.c.l.b16 %v82
    %v98 = vunpack.c.l.b16 %v83
    %v99 = vpack.c.b16 %v96, %v95
    %v100 = vpack.c.b16 %v98, %v97
    %v104 = vsel %vm46, %v79, 0
    %106 = vmatprep.subr.bf16.mxu0 0
    %107 = vmatpush1.bf16.msra.mxu0 %v99
    %108 = vmatprep.subr.bf16.mxu0 0
    %109 = vmatpush1.bf16.msra.mxu0 %v100
    %110 = vmatprep.subr.bf16.mxu0 0
    %111 = vmatpush1.bf16.msra.mxu0 0
    %112 = vmatprep.subr.bf16.mxu0 0
    %113 = vmatpush1.bf16.msra.mxu0 0
    %114 = vmatprep.subr.bf16.mxu0 0
    %115 = vmatpush1.bf16.msra.mxu0 0
    %116 = vmatprep.subr.bf16.mxu0 0
    %117 = vmatpush1.bf16.msra.mxu0 0
    %118 = vmatprep.subr.bf16.mxu0 0
    %119 = vmatpush1.bf16.msra.mxu0 0
    %120 = vmatprep.subr.bf16.mxu0 0
    %121 = vmatpush1.bf16.msra.mxu0 0
    %122 = vmatprep.subr.bf16.mxu0 0
    %123 = vmatpush1.bf16.msra.mxu0 0
    %124 = vmatprep.subr.bf16.mxu0 0
    %125 = vmatpush1.bf16.msra.mxu0 0
    %126 = vmatprep.subr.bf16.mxu0 0
    %127 = vmatpush1.bf16.msra.mxu0 0
    %128 = vmatprep.subr.bf16.mxu0 0
    %129 = vmatpush1.bf16.msra.mxu0 0
    %130 = vmatprep.subr.bf16.mxu0 0
    %131 = vmatpush1.bf16.msra.mxu0 0
    %132 = vmatprep.subr.bf16.mxu0 0
    %133 = vmatpush1.bf16.msra.mxu0 0
    %134 = vmatprep.subr.bf16.mxu0 0
    %135 = vmatpush1.bf16.msra.mxu0 0
    %136 = vmatprep.subr.bf16.mxu0 0
    %137 = vmatpush1.bf16.msra.mxu0 0
    %138 = vmatprep.mubr.bf16.mxu0 0
    %139 = vmatmul.mubr.bf16.gmra.mrb[0].mxu0 %v104
    %v140 = vpop.f32.mrb[0].mxu0
    %v141 = vadd.f32 %v89, %v140
    %v142 = vpop.f32.mrb[0].mxu0
    %v143 = vpop.f32.mrb[0].mxu0
    %v144 = vadd.f32 %v89, %v143
    %v145 = vpop.f32.mrb[0].mxu0
    %146 = vdwg.mxu0
    %v147 = vmax.f32 %v141, 0.0
    %v148 = vmax.f32 %v144, 0.0
    %149 = vst.msk [vmem:[#allocation7] sm:$0xff] %vm46, %v147
    %150 = vst.msk [vmem:[#allocation7 + $0x8] sm:$0xff] %vm46, %v148
    // Predicated region
    $region22: #{tpu_custom_call.1} parent=1 // pred_check
      _
    $region23: #{tpu_custom_call.1} parent=1 // pred_check_branch
      %152 = sbr.rel (0) target = $region25
    $region24: #{tpu_custom_call.1} parent=1 // pred_region
      %s154 = ssub.s32 256, 256
      %155 = vsyncadd [#allocation4], %s154
      %s156 = sshll.u32 [#allocation7], 4
      %s157 = int_to_ptr.vmem [resolvable:$true] %s156
      %162 = dma.vmem_to_hbm [thread:$0]  %s157, 256, %s3, [#allocation4], 128, 128, 8
    $region25: #{tpu_custom_call.1} parent=1 // pred_fallthru
      _
    // Predicated region
    $region26: #{tpu_custom_call.1} parent=1 // pred_check
      _
    $region27: #{tpu_custom_call.1} parent=1 // pred_check_branch
      %164 = sbr.rel (0) target = $region29
    $region28: #{tpu_custom_call.1} parent=1 // pred_region
      %165 = dma.done [#allocation4], 256
    $region29: #{tpu_custom_call.1} parent=1 // pred_fallthru
      _
    %166 = vsyncpa [#allocation3], 1
    %167 = vsyncpa [#allocation6], 1
    %168 = vsyncpa [#allocation4], 1

</llo_original>
